<compile_context>
chip_gen: v6e
topology: v6e:2x2x1
jax: 0.10.0
libtpu: 0.0.40
codegen_flags: <defaults>
</compile_context>

<pallas_src>
import jax
import jax.numpy as jnp
from jax.experimental import pallas as pl
from jax.experimental.pallas import tpu as pltpu


def _mm_plus_mm_kernel(w1_ref, w2_ref, w3_ref, xT_ref, oT_ref):
    # xT_ref / oT_ref: (3, TILE_M) blocks, lane-dense along M.
    # w*_ref: (3, 3) weights in SMEM, read as scalars.
    xr = [xT_ref[k : k + 1, :] for k in range(3)]  # three (1, TILE_M) rows

    def matT(w_ref, rows):
        # (rows^T @ w)^T == w^T @ rows : out[j] = sum_k w[k, j] * rows[k]
        return [
            w_ref[0, j] * rows[0] + w_ref[1, j] * rows[1] + w_ref[2, j] * rows[2]
            for j in range(3)
        ]

    t1 = matT(w1_ref, xr)      # (x @ w1)^T rows
    xw2 = matT(w2_ref, xr)     # (x @ w2)^T rows
    xw3 = matT(w3_ref, xr)     # (x @ w3)^T rows
    t2 = [t1[j] * xw2[j] + xw3[j] for j in range(3)]
    t2w2 = matT(w2_ref, t2)    # (t2 @ w2)^T rows
    for j in range(3):
        oT_ref[j : j + 1, :] = (t1[j] * t2w2[j] + xw3[j]).astype(oT_ref.dtype)


def mm_plus_mm(x, w1, w2, w3, *, tile_m=2048):
    """x: (M, 3), w*: (3, 3) -> (M, 3)."""
    M, K = x.shape
    assert K == 3 and w1.shape == (3, 3)

    # Lane-align the M axis; for small M use one small tile instead of 2048.
    m_aligned = max(128, ((M + 127) // 128) * 128)
    tile_m = min(tile_m, m_aligned)
    m_pad = ((M + tile_m - 1) // tile_m) * tile_m

    xT = x.T  # (3, M) — layout plumbing in the wrapper, not kernel work
    if m_pad != M:
        xT = jnp.pad(xT, ((0, 0), (0, m_pad - M)))

    grid = (m_pad // tile_m,)

    smem_spec = pl.BlockSpec(memory_space=pltpu.MemorySpace.SMEM)
    outT = pl.pallas_call(
        _mm_plus_mm_kernel,
        out_shape=jax.ShapeDtypeStruct((3, m_pad), x.dtype),
        grid=grid,
        in_specs=[
            smem_spec,  # w1
            smem_spec,  # w2
            smem_spec,  # w3
            pl.BlockSpec((3, tile_m), lambda i: (0, i)),
        ],
        out_specs=pl.BlockSpec((3, tile_m), lambda i: (0, i)),
        compiler_params=pltpu.CompilerParams(
            dimension_semantics=("parallel",),
        ),
    )(w1, w2, w3, xT)

    return outT[:, :M].T


class Model:
    """JAX/Pallas port of the PyTorch Model (deterministic params)."""

    def __init__(self, key):
        k1, k2, k3, k4 = jax.random.split(key, 4)
        self.w1 = jax.random.normal(k1, (3, 3), dtype=jnp.float32)
        self.w2 = jax.random.normal(k2, (3, 3), dtype=jnp.float32)
        self.w3 = jax.random.normal(k3, (3, 3), dtype=jnp.float32)
        self.w4 = jax.random.normal(k4, (3, 3), dtype=jnp.float32)  # unused in output

    def __call__(self, x):
        return mm_plus_mm(x, self.w1, self.w2, self.w3)


def _reference(x, w1, w2, w3):
    t1 = x @ w1
    t2 = t1 * (x @ w2) + x @ w3
    t4 = t1 * (t2 @ w2) + x @ w3
    return t4


if __name__ == "__main__":
    key = jax.random.PRNGKey(0)
    k_in, k_model = jax.random.split(key)

    # input must have last dim 3 to be mm-compatible with the 3x3 weights
    x = jax.random.normal(k_in, (8, 3), dtype=jnp.float32)

    model = Model(k_model)
    out = model(x)
    out = jax.block_until_ready(out)

    ref = _reference(x, model.w1, model.w2, model.w3)
    assert out.shape == (8, 3)
    assert jnp.allclose(out, ref, atol=1e-4, rtol=1e-4)

    print("KERNEL_OK")
</pallas_src>

<mosaic_0001>
module attributes {stable_mosaic.version = 11 : i64} {
  func.func @_mm_plus_mm_kernel(%arg0: i32, %arg1: memref<3x3xf32, #tpu.memory_space<smem>>, %arg2: memref<3x3xf32, #tpu.memory_space<smem>>, %arg3: memref<3x3xf32, #tpu.memory_space<smem>>, %arg4: memref<3x128xf32, #tpu.memory_space<vmem>>, %arg5: memref<3x128xf32, #tpu.memory_space<vmem>>) attributes {dimension_semantics = [#tpu.dimension_semantics<parallel>], iteration_bounds = array<i64: 1>, scalar_prefetch = 0 : i64, scratch_operands = 0 : i64, tpu.core_type = #tpu.core_type<tc>, window_params = [{transform_indices = @transform_0, window_bounds = array<i64: 3, 3>}, {transform_indices = @transform_1, window_bounds = array<i64: 3, 3>}, {transform_indices = @transform_2, window_bounds = array<i64: 3, 3>}, {transform_indices = @transform_3, window_bounds = array<i64: 3, 128>}, {transform_indices = @transform_4, window_bounds = array<i64: 3, 128>}]} {
    %c0 = arith.constant 0 : index
    %c0_0 = arith.constant 0 : index
    %0 = vector.load %arg4[%c0, %c0_0] : memref<3x128xf32, #tpu.memory_space<vmem>>, vector<1x128xf32>
    %c1 = arith.constant 1 : index
    %c0_1 = arith.constant 0 : index
    %1 = vector.load %arg4[%c1, %c0_1] : memref<3x128xf32, #tpu.memory_space<vmem>>, vector<1x128xf32>
    %c2 = arith.constant 2 : index
    %c0_2 = arith.constant 0 : index
    %2 = vector.load %arg4[%c2, %c0_2] : memref<3x128xf32, #tpu.memory_space<vmem>>, vector<1x128xf32>
    %c0_3 = arith.constant 0 : index
    %c0_4 = arith.constant 0 : index
    %3 = memref.load %arg1[%c0_3, %c0_4] : memref<3x3xf32, #tpu.memory_space<smem>>
    %4 = vector.broadcast %3 : f32 to vector<1x128xf32>
    %5 = arith.mulf %4, %0 : vector<1x128xf32>
    %c1_5 = arith.constant 1 : index
    %c0_6 = arith.constant 0 : index
    %6 = memref.load %arg1[%c1_5, %c0_6] : memref<3x3xf32, #tpu.memory_space<smem>>
    %7 = vector.broadcast %6 : f32 to vector<1x128xf32>
    %8 = arith.mulf %7, %1 : vector<1x128xf32>
    %9 = arith.addf %5, %8 : vector<1x128xf32>
    %c2_7 = arith.constant 2 : index
    %c0_8 = arith.constant 0 : index
    %10 = memref.load %arg1[%c2_7, %c0_8] : memref<3x3xf32, #tpu.memory_space<smem>>
    %11 = vector.broadcast %10 : f32 to vector<1x128xf32>
    %12 = arith.mulf %11, %2 : vector<1x128xf32>
    %13 = arith.addf %9, %12 : vector<1x128xf32>
    %c0_9 = arith.constant 0 : index
    %c1_10 = arith.constant 1 : index
    %14 = memref.load %arg1[%c0_9, %c1_10] : memref<3x3xf32, #tpu.memory_space<smem>>
    %15 = vector.broadcast %14 : f32 to vector<1x128xf32>
    %16 = arith.mulf %15, %0 : vector<1x128xf32>
    %c1_11 = arith.constant 1 : index
    %c1_12 = arith.constant 1 : index
    %17 = memref.load %arg1[%c1_11, %c1_12] : memref<3x3xf32, #tpu.memory_space<smem>>
    %18 = vector.broadcast %17 : f32 to vector<1x128xf32>
    %19 = arith.mulf %18, %1 : vector<1x128xf32>
    %20 = arith.addf %16, %19 : vector<1x128xf32>
    %c2_13 = arith.constant 2 : index
    %c1_14 = arith.constant 1 : index
    %21 = memref.load %arg1[%c2_13, %c1_14] : memref<3x3xf32, #tpu.memory_space<smem>>
    %22 = vector.broadcast %21 : f32 to vector<1x128xf32>
    %23 = arith.mulf %22, %2 : vector<1x128xf32>
    %24 = arith.addf %20, %23 : vector<1x128xf32>
    %c0_15 = arith.constant 0 : index
    %c2_16 = arith.constant 2 : index
    %25 = memref.load %arg1[%c0_15, %c2_16] : memref<3x3xf32, #tpu.memory_space<smem>>
    %26 = vector.broadcast %25 : f32 to vector<1x128xf32>
    %27 = arith.mulf %26, %0 : vector<1x128xf32>
    %c1_17 = arith.constant 1 : index
    %c2_18 = arith.constant 2 : index
    %28 = memref.load %arg1[%c1_17, %c2_18] : memref<3x3xf32, #tpu.memory_space<smem>>
    %29 = vector.broadcast %28 : f32 to vector<1x128xf32>
    %30 = arith.mulf %29, %1 : vector<1x128xf32>
    %31 = arith.addf %27, %30 : vector<1x128xf32>
    %c2_19 = arith.constant 2 : index
    %c2_20 = arith.constant 2 : index
    %32 = memref.load %arg1[%c2_19, %c2_20] : memref<3x3xf32, #tpu.memory_space<smem>>
    %33 = vector.broadcast %32 : f32 to vector<1x128xf32>
    %34 = arith.mulf %33, %2 : vector<1x128xf32>
    %35 = arith.addf %31, %34 : vector<1x128xf32>
    %c0_21 = arith.constant 0 : index
    %c0_22 = arith.constant 0 : index
    %36 = memref.load %arg2[%c0_21, %c0_22] : memref<3x3xf32, #tpu.memory_space<smem>>
    %37 = vector.broadcast %36 : f32 to vector<1x128xf32>
    %38 = arith.mulf %37, %0 : vector<1x128xf32>
    %c1_23 = arith.constant 1 : index
    %c0_24 = arith.constant 0 : index
    %39 = memref.load %arg2[%c1_23, %c0_24] : memref<3x3xf32, #tpu.memory_space<smem>>
    %40 = vector.broadcast %39 : f32 to vector<1x128xf32>
    %41 = arith.mulf %40, %1 : vector<1x128xf32>
    %42 = arith.addf %38, %41 : vector<1x128xf32>
    %c2_25 = arith.constant 2 : index
    %c0_26 = arith.constant 0 : index
    %43 = memref.load %arg2[%c2_25, %c0_26] : memref<3x3xf32, #tpu.memory_space<smem>>
    %44 = vector.broadcast %43 : f32 to vector<1x128xf32>
    %45 = arith.mulf %44, %2 : vector<1x128xf32>
    %46 = arith.addf %42, %45 : vector<1x128xf32>
    %c0_27 = arith.constant 0 : index
    %c1_28 = arith.constant 1 : index
    %47 = memref.load %arg2[%c0_27, %c1_28] : memref<3x3xf32, #tpu.memory_space<smem>>
    %48 = vector.broadcast %47 : f32 to vector<1x128xf32>
    %49 = arith.mulf %48, %0 : vector<1x128xf32>
    %c1_29 = arith.constant 1 : index
    %c1_30 = arith.constant 1 : index
    %50 = memref.load %arg2[%c1_29, %c1_30] : memref<3x3xf32, #tpu.memory_space<smem>>
    %51 = vector.broadcast %50 : f32 to vector<1x128xf32>
    %52 = arith.mulf %51, %1 : vector<1x128xf32>
    %53 = arith.addf %49, %52 : vector<1x128xf32>
    %c2_31 = arith.constant 2 : index
    %c1_32 = arith.constant 1 : index
    %54 = memref.load %arg2[%c2_31, %c1_32] : memref<3x3xf32, #tpu.memory_space<smem>>
    %55 = vector.broadcast %54 : f32 to vector<1x128xf32>
    %56 = arith.mulf %55, %2 : vector<1x128xf32>
    %57 = arith.addf %53, %56 : vector<1x128xf32>
    %c0_33 = arith.constant 0 : index
    %c2_34 = arith.constant 2 : index
    %58 = memref.load %arg2[%c0_33, %c2_34] : memref<3x3xf32, #tpu.memory_space<smem>>
    %59 = vector.broadcast %58 : f32 to vector<1x128xf32>
    %60 = arith.mulf %59, %0 : vector<1x128xf32>
    %c1_35 = arith.constant 1 : index
    %c2_36 = arith.constant 2 : index
    %61 = memref.load %arg2[%c1_35, %c2_36] : memref<3x3xf32, #tpu.memory_space<smem>>
    %62 = vector.broadcast %61 : f32 to vector<1x128xf32>
    %63 = arith.mulf %62, %1 : vector<1x128xf32>
    %64 = arith.addf %60, %63 : vector<1x128xf32>
    %c2_37 = arith.constant 2 : index
    %c2_38 = arith.constant 2 : index
    %65 = memref.load %arg2[%c2_37, %c2_38] : memref<3x3xf32, #tpu.memory_space<smem>>
    %66 = vector.broadcast %65 : f32 to vector<1x128xf32>
    %67 = arith.mulf %66, %2 : vector<1x128xf32>
    %68 = arith.addf %64, %67 : vector<1x128xf32>
    %c0_39 = arith.constant 0 : index
    %c0_40 = arith.constant 0 : index
    %69 = memref.load %arg3[%c0_39, %c0_40] : memref<3x3xf32, #tpu.memory_space<smem>>
    %70 = vector.broadcast %69 : f32 to vector<1x128xf32>
    %71 = arith.mulf %70, %0 : vector<1x128xf32>
    %c1_41 = arith.constant 1 : index
    %c0_42 = arith.constant 0 : index
    %72 = memref.load %arg3[%c1_41, %c0_42] : memref<3x3xf32, #tpu.memory_space<smem>>
    %73 = vector.broadcast %72 : f32 to vector<1x128xf32>
    %74 = arith.mulf %73, %1 : vector<1x128xf32>
    %75 = arith.addf %71, %74 : vector<1x128xf32>
    %c2_43 = arith.constant 2 : index
    %c0_44 = arith.constant 0 : index
    %76 = memref.load %arg3[%c2_43, %c0_44] : memref<3x3xf32, #tpu.memory_space<smem>>
    %77 = vector.broadcast %76 : f32 to vector<1x128xf32>
    %78 = arith.mulf %77, %2 : vector<1x128xf32>
    %79 = arith.addf %75, %78 : vector<1x128xf32>
    %c0_45 = arith.constant 0 : index
    %c1_46 = arith.constant 1 : index
    %80 = memref.load %arg3[%c0_45, %c1_46] : memref<3x3xf32, #tpu.memory_space<smem>>
    %81 = vector.broadcast %80 : f32 to vector<1x128xf32>
    %82 = arith.mulf %81, %0 : vector<1x128xf32>
    %c1_47 = arith.constant 1 : index
    %c1_48 = arith.constant 1 : index
    %83 = memref.load %arg3[%c1_47, %c1_48] : memref<3x3xf32, #tpu.memory_space<smem>>
    %84 = vector.broadcast %83 : f32 to vector<1x128xf32>
    %85 = arith.mulf %84, %1 : vector<1x128xf32>
    %86 = arith.addf %82, %85 : vector<1x128xf32>
    %c2_49 = arith.constant 2 : index
    %c1_50 = arith.constant 1 : index
    %87 = memref.load %arg3[%c2_49, %c1_50] : memref<3x3xf32, #tpu.memory_space<smem>>
    %88 = vector.broadcast %87 : f32 to vector<1x128xf32>
    %89 = arith.mulf %88, %2 : vector<1x128xf32>
    %90 = arith.addf %86, %89 : vector<1x128xf32>
    %c0_51 = arith.constant 0 : index
    %c2_52 = arith.constant 2 : index
    %91 = memref.load %arg3[%c0_51, %c2_52] : memref<3x3xf32, #tpu.memory_space<smem>>
    %92 = vector.broadcast %91 : f32 to vector<1x128xf32>
    %93 = arith.mulf %92, %0 : vector<1x128xf32>
    %c1_53 = arith.constant 1 : index
    %c2_54 = arith.constant 2 : index
    %94 = memref.load %arg3[%c1_53, %c2_54] : memref<3x3xf32, #tpu.memory_space<smem>>
    %95 = vector.broadcast %94 : f32 to vector<1x128xf32>
    %96 = arith.mulf %95, %1 : vector<1x128xf32>
    %97 = arith.addf %93, %96 : vector<1x128xf32>
    %c2_55 = arith.constant 2 : index
    %c2_56 = arith.constant 2 : index
    %98 = memref.load %arg3[%c2_55, %c2_56] : memref<3x3xf32, #tpu.memory_space<smem>>
    %99 = vector.broadcast %98 : f32 to vector<1x128xf32>
    %100 = arith.mulf %99, %2 : vector<1x128xf32>
    %101 = arith.addf %97, %100 : vector<1x128xf32>
    %102 = arith.mulf %13, %46 : vector<1x128xf32>
    %103 = arith.addf %102, %79 : vector<1x128xf32>
    %104 = arith.mulf %24, %57 : vector<1x128xf32>
    %105 = arith.addf %104, %90 : vector<1x128xf32>
    %106 = arith.mulf %35, %68 : vector<1x128xf32>
    %107 = arith.addf %106, %101 : vector<1x128xf32>
    %c0_57 = arith.constant 0 : index
    %c0_58 = arith.constant 0 : index
    %108 = memref.load %arg2[%c0_57, %c0_58] : memref<3x3xf32, #tpu.memory_space<smem>>
    %109 = vector.broadcast %108 : f32 to vector<1x128xf32>
    %110 = arith.mulf %109, %103 : vector<1x128xf32>
    %c1_59 = arith.constant 1 : index
    %c0_60 = arith.constant 0 : index
    %111 = memref.load %arg2[%c1_59, %c0_60] : memref<3x3xf32, #tpu.memory_space<smem>>
    %112 = vector.broadcast %111 : f32 to vector<1x128xf32>
    %113 = arith.mulf %112, %105 : vector<1x128xf32>
    %114 = arith.addf %110, %113 : vector<1x128xf32>
    %c2_61 = arith.constant 2 : index
    %c0_62 = arith.constant 0 : index
    %115 = memref.load %arg2[%c2_61, %c0_62] : memref<3x3xf32, #tpu.memory_space<smem>>
    %116 = vector.broadcast %115 : f32 to vector<1x128xf32>
    %117 = arith.mulf %116, %107 : vector<1x128xf32>
    %118 = arith.addf %114, %117 : vector<1x128xf32>
    %c0_63 = arith.constant 0 : index
    %c1_64 = arith.constant 1 : index
    %119 = memref.load %arg2[%c0_63, %c1_64] : memref<3x3xf32, #tpu.memory_space<smem>>
    %120 = vector.broadcast %119 : f32 to vector<1x128xf32>
    %121 = arith.mulf %120, %103 : vector<1x128xf32>
    %c1_65 = arith.constant 1 : index
    %c1_66 = arith.constant 1 : index
    %122 = memref.load %arg2[%c1_65, %c1_66] : memref<3x3xf32, #tpu.memory_space<smem>>
    %123 = vector.broadcast %122 : f32 to vector<1x128xf32>
    %124 = arith.mulf %123, %105 : vector<1x128xf32>
    %125 = arith.addf %121, %124 : vector<1x128xf32>
    %c2_67 = arith.constant 2 : index
    %c1_68 = arith.constant 1 : index
    %126 = memref.load %arg2[%c2_67, %c1_68] : memref<3x3xf32, #tpu.memory_space<smem>>
    %127 = vector.broadcast %126 : f32 to vector<1x128xf32>
    %128 = arith.mulf %127, %107 : vector<1x128xf32>
    %129 = arith.addf %125, %128 : vector<1x128xf32>
    %c0_69 = arith.constant 0 : index
    %c2_70 = arith.constant 2 : index
    %130 = memref.load %arg2[%c0_69, %c2_70] : memref<3x3xf32, #tpu.memory_space<smem>>
    %131 = vector.broadcast %130 : f32 to vector<1x128xf32>
    %132 = arith.mulf %131, %103 : vector<1x128xf32>
    %c1_71 = arith.constant 1 : index
    %c2_72 = arith.constant 2 : index
    %133 = memref.load %arg2[%c1_71, %c2_72] : memref<3x3xf32, #tpu.memory_space<smem>>
    %134 = vector.broadcast %133 : f32 to vector<1x128xf32>
    %135 = arith.mulf %134, %105 : vector<1x128xf32>
    %136 = arith.addf %132, %135 : vector<1x128xf32>
    %c2_73 = arith.constant 2 : index
    %c2_74 = arith.constant 2 : index
    %137 = memref.load %arg2[%c2_73, %c2_74] : memref<3x3xf32, #tpu.memory_space<smem>>
    %138 = vector.broadcast %137 : f32 to vector<1x128xf32>
    %139 = arith.mulf %138, %107 : vector<1x128xf32>
    %140 = arith.addf %136, %139 : vector<1x128xf32>
    %141 = arith.mulf %13, %118 : vector<1x128xf32>
    %142 = arith.addf %141, %79 : vector<1x128xf32>
    %c0_75 = arith.constant 0 : index
    %c0_76 = arith.constant 0 : index
    %143 = vector.load %arg5[%c0_75, %c0_76] : memref<3x128xf32, #tpu.memory_space<vmem>>, vector<1x128xf32>
    tpu.vector_store %arg5[%c0_75, %c0_76], %142 {strides = array<i32>} : memref<3x128xf32, #tpu.memory_space<vmem>>, vector<1x128xf32>,
    %144 = arith.mulf %24, %129 : vector<1x128xf32>
    %145 = arith.addf %144, %90 : vector<1x128xf32>
    %c1_77 = arith.constant 1 : index
    %c0_78 = arith.constant 0 : index
    %146 = vector.load %arg5[%c1_77, %c0_78] : memref<3x128xf32, #tpu.memory_space<vmem>>, vector<1x128xf32>
    tpu.vector_store %arg5[%c1_77, %c0_78], %145 {strides = array<i32>} : memref<3x128xf32, #tpu.memory_space<vmem>>, vector<1x128xf32>,
    %147 = arith.mulf %35, %140 : vector<1x128xf32>
    %148 = arith.addf %147, %101 : vector<1x128xf32>
    %c2_79 = arith.constant 2 : index
    %c0_80 = arith.constant 0 : index
    %149 = vector.load %arg5[%c2_79, %c0_80] : memref<3x128xf32, #tpu.memory_space<vmem>>, vector<1x128xf32>
    tpu.vector_store %arg5[%c2_79, %c0_80], %148 {strides = array<i32>} : memref<3x128xf32, #tpu.memory_space<vmem>>, vector<1x128xf32>,
    return
  }
  func.func @transform_0(%arg0: i32) -> (i32, i32) {
    %c0_i32 = arith.constant 0 : i32
    %c0_i32_0 = arith.constant 0 : i32
    %c0_i32_1 = arith.constant 0 : i32
    return %c0_i32, %c0_i32_0 : i32, i32
  }
  func.func @transform_1(%arg0: i32) -> (i32, i32) {
    %c0_i32 = arith.constant 0 : i32
    %c0_i32_0 = arith.constant 0 : i32
    %c0_i32_1 = arith.constant 0 : i32
    return %c0_i32, %c0_i32_0 : i32, i32
  }
  func.func @transform_2(%arg0: i32) -> (i32, i32) {
    %c0_i32 = arith.constant 0 : i32
    %c0_i32_0 = arith.constant 0 : i32
    %c0_i32_1 = arith.constant 0 : i32
    return %c0_i32, %c0_i32_0 : i32, i32
  }
  func.func @transform_3(%arg0: i32) -> (i32, i32) {
    %c0_i32 = arith.constant 0 : i32
    %c0_i32_0 = arith.constant 0 : i32
    return %c0_i32, %arg0 : i32, i32
  }
  func.func @transform_4(%arg0: i32) -> (i32, i32) {
    %c0_i32 = arith.constant 0 : i32
    %c0_i32_0 = arith.constant 0 : i32
    return %c0_i32, %arg0 : i32, i32
  }
}

</mosaic_0001>

<llo_original>
// kernel: tpu_custom_call.1
$region0: #{tpu_custom_call.1}
  #allocation0 [shape = 'u32[]', space=smem, size = 0x4, offset = 0x4, fixed_abs, tag = 'smem constant byte address 0x4 - core index']
  #allocation1 [shape = 'u32[144,128]{1,0:T(1,128)}', space=vmem, size = 0x12000, scoped, tag = 'internal scratch']
  %s0 = inlined_call_operand.hbm [shape: f32[3,3], index: 0, kind: input, shape index: {}]
  %s1 = inlined_call_operand.hbm [shape: f32[3,3], index: 1, kind: input, shape index: {}]
  %s2 = inlined_call_operand.hbm [shape: f32[3,3], index: 2, kind: input, shape index: {}]
  %s3 = inlined_call_operand.vmem [shape: f32[3,128], index: 3, kind: input, shape index: {}]
  %s4 = inlined_call_operand.hbm [shape: f32[3,128], index: 4, kind: output, shape index: {}]
  %s5 = sld [smem:[#allocation0]]
  $region38: #{tpu_custom_call.1} parent=0
    _
  %s7 = ssub.s32 1, %s5
  %s8 = scalar_select 0, %s7, %s5
  $region1: #{tpu_custom_call.1} parent=0
    #allocation2 [shape = 'u8[2048]{0}', space=smem, size = 0x800, scoped, tag = 'input window, operand 0, single buffered']
    #allocation3 [shape = 's32[1]{0}', space=sflag, size = 0x4, scoped, tag = 'scoped memory for tpu_custom_call.1']
    #allocation4 [shape = 's32[1]{0}', space=sflag, size = 0x4, scoped, tag = 'scoped memory for tpu_custom_call.1']
    #allocation5 [shape = 'u8[2048]{0}', space=smem, size = 0x800, scoped, tag = 'input window, operand 1, single buffered']
    #allocation6 [shape = 's32[1]{0}', space=sflag, size = 0x4, scoped, tag = 'scoped memory for tpu_custom_call.1']
    #allocation7 [shape = 'u8[2048]{0}', space=smem, size = 0x800, scoped, tag = 'input window, operand 2, single buffered']
    #allocation8 [shape = 'u8[2048]{0}', space=vmem, size = 0x800, scoped, tag = 'output window, operand 0, single buffered']
    %9 = vsyncpa [#allocation4], 0
    %10 = vsyncpa [#allocation6], 0
    %11 = vsyncpa [#allocation3], 0
    // Predicated region
    $region2: #{tpu_custom_call.1} parent=1 // pred_check
      _
    $region3: #{tpu_custom_call.1} parent=1 // pred_check_branch
      %13 = sbr.rel (0) target = $region5
    $region4: #{tpu_custom_call.1} parent=1 // pred_region
      %s15 = ssub.s32 64, 64
      %16 = vsyncadd [#allocation4], %s15
      %19 = dma.hbm_to_smem %s0, 64, [#allocation2], [#allocation4]
    $region5: #{tpu_custom_call.1} parent=1 // pred_fallthru
      _
    // Predicated region
    $region6: #{tpu_custom_call.1} parent=1 // pred_check
      _
    $region7: #{tpu_custom_call.1} parent=1 // pred_check_branch
      %21 = sbr.rel (0) target = $region9
    $region8: #{tpu_custom_call.1} parent=1 // pred_region
      %s23 = ssub.s32 64, 64
      %24 = vsyncadd [#allocation6], %s23
      %27 = dma.hbm_to_smem %s1, 64, [#allocation5], [#allocation6]
    $region9: #{tpu_custom_call.1} parent=1 // pred_fallthru
      _
    // Predicated region
    $region10: #{tpu_custom_call.1} parent=1 // pred_check
      _
    $region11: #{tpu_custom_call.1} parent=1 // pred_check_branch
      %29 = sbr.rel (0) target = $region13
    $region12: #{tpu_custom_call.1} parent=1 // pred_region
      %s31 = ssub.s32 64, 64
      %32 = vsyncadd [#allocation6], %s31
      %35 = dma.hbm_to_smem %s2, 64, [#allocation7], [#allocation6]
    $region13: #{tpu_custom_call.1} parent=1 // pred_fallthru
      _
    // Predicated region
    $region14: #{tpu_custom_call.1} parent=1 // pred_check
      _
    $region15: #{tpu_custom_call.1} parent=1 // pred_check_branch
      %37 = sbr.rel (0) target = $region17
    $region16: #{tpu_custom_call.1} parent=1 // pred_region
      _
    $region17: #{tpu_custom_call.1} parent=1 // pred_fallthru
      _
    // Predicated region
    $region18: #{tpu_custom_call.1} parent=1 // pred_check
      _
    $region19: #{tpu_custom_call.1} parent=1 // pred_check_branch
      %39 = sbr.rel (0) target = $region21
    $region20: #{tpu_custom_call.1} parent=1 // pred_region
      %40 = dma.done [#allocation4], 64
    $region21: #{tpu_custom_call.1} parent=1 // pred_fallthru
      _
    // Predicated region
    $region22: #{tpu_custom_call.1} parent=1 // pred_check
      _
    $region23: #{tpu_custom_call.1} parent=1 // pred_check_branch
      %42 = sbr.rel (0) target = $region25
    $region24: #{tpu_custom_call.1} parent=1 // pred_region
      %43 = dma.done [#allocation6], 64
    $region25: #{tpu_custom_call.1} parent=1 // pred_fallthru
      _
    // Predicated region
    $region26: #{tpu_custom_call.1} parent=1 // pred_check
      _
    $region27: #{tpu_custom_call.1} parent=1 // pred_check_branch
      %45 = sbr.rel (0) target = $region29
    $region28: #{tpu_custom_call.1} parent=1 // pred_region
      %46 = dma.done [#allocation6], 64
    $region29: #{tpu_custom_call.1} parent=1 // pred_fallthru
      _
    %47 = sfence
    %v48 = vld [vmem:[%s3] sm:$0x1]
    %v49 = vld [vmem:[%s3 + $0x1] sm:$0x1]
    %v50 = vld [vmem:[%s3 + $0x2] sm:$0x1]
    %s51 = sld [smem:[#allocation2]]
    %v52 = vstv %s51
    %v53 = vmul.f32 %v52, %v48
    %s54 = sld [smem:[#allocation2 + $0x80]]
    %v55 = vstv %s54
    %v56 = vmul.f32 %v55, %v49
    %v57 = vadd.f32 %v53, %v56
    %s58 = sld [smem:[#allocation2 + $0x100]]
    %v59 = vstv %s58
    %v60 = vmul.f32 %v59, %v50
    %v61 = vadd.f32 %v57, %v60
    %s62 = sld [smem:[#allocation2 + $0x1]]
    %v63 = vstv %s62
    %v64 = vmul.f32 %v63, %v48
    %s65 = sld [smem:[#allocation2 + $0x81]]
    %v66 = vstv %s65
    %v67 = vmul.f32 %v66, %v49
    %v68 = vadd.f32 %v64, %v67
    %s69 = sld [smem:[#allocation2 + $0x101]]
    %v70 = vstv %s69
    %v71 = vmul.f32 %v70, %v50
    %v72 = vadd.f32 %v68, %v71
    %s73 = sld [smem:[#allocation2 + $0x2]]
    %v74 = vstv %s73
    %v75 = vmul.f32 %v74, %v48
    %s76 = sld [smem:[#allocation2 + $0x82]]
    %v77 = vstv %s76
    %v78 = vmul.f32 %v77, %v49
    %v79 = vadd.f32 %v75, %v78
    %s80 = sld [smem:[#allocation2 + $0x102]]
    %v81 = vstv %s80
    %v82 = vmul.f32 %v81, %v50
    %v83 = vadd.f32 %v79, %v82
    %s84 = sld [smem:[#allocation5]]
    %v85 = vstv %s84
    %v86 = vmul.f32 %v85, %v48
    %s87 = sld [smem:[#allocation5 + $0x80]]
    %v88 = vstv %s87
    %v89 = vmul.f32 %v88, %v49
    %v90 = vadd.f32 %v86, %v89
    %s91 = sld [smem:[#allocation5 + $0x100]]
    %v92 = vstv %s91
    %v93 = vmul.f32 %v92, %v50
    %v94 = vadd.f32 %v90, %v93
    %s95 = sld [smem:[#allocation5 + $0x1]]
    %v96 = vstv %s95
    %v97 = vmul.f32 %v96, %v48
    %s98 = sld [smem:[#allocation5 + $0x81]]
    %v99 = vstv %s98
    %v100 = vmul.f32 %v99, %v49
    %v101 = vadd.f32 %v97, %v100
    %s102 = sld [smem:[#allocation5 + $0x101]]
    %v103 = vstv %s102
    %v104 = vmul.f32 %v103, %v50
    %v105 = vadd.f32 %v101, %v104
    %s106 = sld [smem:[#allocation5 + $0x2]]
    %v107 = vstv %s106
    %v108 = vmul.f32 %v107, %v48
    %s109 = sld [smem:[#allocation5 + $0x82]]
    %v110 = vstv %s109
    %v111 = vmul.f32 %v110, %v49
    %v112 = vadd.f32 %v108, %v111
    %s113 = sld [smem:[#allocation5 + $0x102]]
    %v114 = vstv %s113
    %v115 = vmul.f32 %v114, %v50
    %v116 = vadd.f32 %v112, %v115
    %s117 = sld [smem:[#allocation7]]
    %v118 = vstv %s117
    %v119 = vmul.f32 %v118, %v48
    %s120 = sld [smem:[#allocation7 + $0x80]]
    %v121 = vstv %s120
    %v122 = vmul.f32 %v121, %v49
    %v123 = vadd.f32 %v119, %v122
    %s124 = sld [smem:[#allocation7 + $0x100]]
    %v125 = vstv %s124
    %v126 = vmul.f32 %v125, %v50
    %v127 = vadd.f32 %v123, %v126
    %s128 = sld [smem:[#allocation7 + $0x1]]
    %v129 = vstv %s128
    %v130 = vmul.f32 %v129, %v48
    %s131 = sld [smem:[#allocation7 + $0x81]]
    %v132 = vstv %s131
    %v133 = vmul.f32 %v132, %v49
    %v134 = vadd.f32 %v130, %v133
    %s135 = sld [smem:[#allocation7 + $0x101]]
    %v136 = vstv %s135
    %v137 = vmul.f32 %v136, %v50
    %v138 = vadd.f32 %v134, %v137
    %s139 = sld [smem:[#allocation7 + $0x2]]
    %v140 = vstv %s139
    %v141 = vmul.f32 %v140, %v48
    %s142 = sld [smem:[#allocation7 + $0x82]]
    %v143 = vstv %s142
    %v144 = vmul.f32 %v143, %v49
    %v145 = vadd.f32 %v141, %v144
    %s146 = sld [smem:[#allocation7 + $0x102]]
    %v147 = vstv %s146
    %v148 = vmul.f32 %v147, %v50
    %v149 = vadd.f32 %v145, %v148
    %v150 = vmul.f32 %v61, %v94
    %v151 = vadd.f32 %v150, %v127
    %v152 = vmul.f32 %v72, %v105
    %v153 = vadd.f32 %v152, %v138
    %v154 = vmul.f32 %v83, %v116
    %v155 = vadd.f32 %v154, %v149
    %v156 = vmul.f32 %v85, %v151
    %v157 = vmul.f32 %v88, %v153
    %v158 = vadd.f32 %v156, %v157
    %v159 = vmul.f32 %v92, %v155
    %v160 = vadd.f32 %v158, %v159
    %v161 = vmul.f32 %v96, %v151
    %v162 = vmul.f32 %v99, %v153
    %v163 = vadd.f32 %v161, %v162
    %v164 = vmul.f32 %v103, %v155
    %v165 = vadd.f32 %v163, %v164
    %v166 = vmul.f32 %v107, %v151
    %v167 = vmul.f32 %v110, %v153
    %v168 = vadd.f32 %v166, %v167
    %v169 = vmul.f32 %v114, %v155
    %v170 = vadd.f32 %v168, %v169
    %v171 = vmul.f32 %v61, %v160
    %v172 = vadd.f32 %v171, %v127
    %173 = vst [vmem:[#allocation8] sm:$0x1] %v172
    %v174 = vmul.f32 %v72, %v165
    %v175 = vadd.f32 %v174, %v138
    %176 = vst [vmem:[#allocation8 + $0x1] sm:$0x1] %v175
    %v177 = vmul.f32 %v83, %v170
    %v178 = vadd.f32 %v177, %v149
    %179 = vst [vmem:[#allocation8 + $0x2] sm:$0x1] %v178
    // Predicated region
    $region30: #{tpu_custom_call.1} parent=1 // pred_check
      _
    $region31: #{tpu_custom_call.1} parent=1 // pred_check_branch
      %181 = sbr.rel (0) target = $region33
    $region32: #{tpu_custom_call.1} parent=1 // pred_region
      %s183 = ssub.s32 64, 64
      %184 = vsyncadd [#allocation3], %s183
      %s186 = sshll.u32 [#allocation8], 4
      %s187 = int_to_ptr.vmem [resolvable:$true] %s186
      %189 = dma.vmem_to_hbm [thread:$0]  %s187, 64, %s4, [#allocation3]
    $region33: #{tpu_custom_call.1} parent=1 // pred_fallthru
      _
    // Predicated region
    $region34: #{tpu_custom_call.1} parent=1 // pred_check
      _
    $region35: #{tpu_custom_call.1} parent=1 // pred_check_branch
      %191 = sbr.rel (0) target = $region37
    $region36: #{tpu_custom_call.1} parent=1 // pred_region
      %192 = dma.done [#allocation3], 64
    $region37: #{tpu_custom_call.1} parent=1 // pred_fallthru
      _
    %193 = vsyncpa [#allocation3], 1
    %194 = vsyncpa [#allocation4], 1
    %195 = vsyncpa [#allocation6], 1

</llo_original>
